<compile_context>
chip_gen: v6e
topology: v6e:2x2x1
jax: 0.10.0
libtpu: 0.0.40
codegen_flags: <defaults>
</compile_context>

<pallas_src>
import jax
import jax.numpy as jnp
from jax import lax
from jax.experimental import pallas as pl
from jax.experimental.pallas import tpu as pltpu


def mixvpr_kernel(x_ref, ln_g_ref, ln_b_ref, w1_ref, b1_ref, w2_ref, b2_ref,
                  wr_ref, wc_ref, bias_r_ref, out_ref):
    TB, C, HW = x_ref.shape
    L = w1_ref.shape[0]
    R = wr_ref.shape[1]
    eps = 1e-5                      # nn.LayerNorm default

    # (TB, C, HW) -> (TB*C, HW): LayerNorm and the mixer MLP act row-wise, so
    # folding batch into the sublane axis is exact and keeps HW on lanes.
    x0 = x_ref[...].reshape(TB * C, HW).astype(jnp.float32)

    def mixer_layer(l, x):
        # two-pass LayerNorm statistics (numerically stable)
        mu = jnp.mean(x, axis=-1, keepdims=True)
        xc = x - mu
        var = jnp.mean(xc * xc, axis=-1, keepdims=True)
        y = xc * lax.rsqrt(var + eps)                       # rsqrt -> EUP
        y = y * ln_g_ref[l] + ln_b_ref[l]                   # (TB*C, HW)
        h = jnp.dot(y.astype(jnp.bfloat16), w1_ref[l],
                    preferred_element_type=jnp.float32) + b1_ref[l]
        h = jnp.maximum(h, 0.0)
        o = jnp.dot(h.astype(jnp.bfloat16), w2_ref[l],
                    preferred_element_type=jnp.float32) + b2_ref[l]
        return x + o

    # fori_loop (not a static unroll) bounds per-layer live ranges in VMEM.
    x = lax.fori_loop(0, L, mixer_layer, x0)

    # Projections reordered by associativity:
    #   out[b, oc, r] = sum_c wc[c, oc] * (sum_hw x[b, c, hw] * wr[hw, r])
    #                   + bc[oc] * sum_hw wr[hw, r] + br[r]
    # The HW contraction uses the tiny R-column weight and is one matmul for
    # the whole grid step; only the small (R, OC)-producing matmul is per-batch.
    u = jnp.dot(x.astype(jnp.bfloat16), wr_ref[...],
                preferred_element_type=jnp.float32)          # (TB*C, R)
    u = u.reshape(TB, C, R).astype(jnp.bfloat16)
    wc = wc_ref[...]                                         # (C, OC) bf16
    bias_r = bias_r_ref[...]                                 # (R, OC) f32

    for b in range(TB):             # static unroll; TB is small
        # contract C: (C, R)^T x (C, OC) -> lane-dense (R, OC)
        r = lax.dot_general(u[b], wc, (((0,), (0,)), ((), ())),
                            preferred_element_type=jnp.float32) + bias_r
        # F.normalize(flatten(1)): global L2 over all OC*R elements
        # (order-invariant, so normalizing the (R, OC) layout is exact).
        inv_norm = lax.rsqrt(jnp.maximum(jnp.sum(r * r), 1e-24))
        out_ref[b] = (r * inv_norm).astype(out_ref.dtype)


def _pick_block_b(batch, c, hw):
    """Fold batch elements per grid step while the x block stays small, and
    keep B // TB >= 2 so v7x's two TensorCores both get grid steps."""
    cap = max(1, min(8, (1 << 18) // max(c * hw, 1)))
    if batch >= 2:
        cap = min(cap, batch // 2)
    for tb in range(min(cap, batch), 0, -1):
        if batch % tb == 0:
            return tb
    return 1


def mixvpr_forward(x, params, *, block_b=None):
    """x: (B, C, H, W) float32.  Returns (B, out_channels * out_rows) float32."""
    ln_g, ln_b, w1, b1, w2, b2, wc, bc, wr, br = params
    B, C, H, W = x.shape
    HW = H * W
    L, _, hid = w1.shape
    OC = wc.shape[1]
    R = wr.shape[1]

    xf = x.reshape(B, C, HW).astype(jnp.float32)
    # MXU operands in bf16 (f32 accumulation inside the kernel).
    w1b = w1.astype(jnp.bfloat16)
    w2b = w2.astype(jnp.bfloat16)
    wcb = wc.astype(jnp.bfloat16)
    wrb = wr.astype(jnp.bfloat16)
    # channel_proj bias folded through row_proj (exact by associativity).
    bias_r = (jnp.sum(wr, axis=0).reshape(R, 1) * bc.reshape(1, OC)
              + br.reshape(R, 1)).astype(jnp.float32)        # (R, OC)

    TB = block_b if block_b is not None else _pick_block_b(B, C, HW)
    assert B % TB == 0

    weights = (ln_g, ln_b, w1b, b1, w2b, b2, wrb, wcb, bias_r)
    w_bytes = sum(int(a.size) * a.dtype.itemsize for a in weights)

    # VMEM budget: double-buffered x/out blocks, double-buffered weights, f32
    # intermediates incl. the (TB*C, hid) hidden and lane-padded u.  Clamped
    # to 40 MiB (fits v7x's 64 MiB physical VMEM with headroom for Mosaic
    # internal scratch; also lifts v5e's 16 MiB default scoped limit).
    x_block = TB * C * HW * 4
    out_block = TB * R * OC * 4
    interm = TB * C * (3 * HW + hid + max(R, 128)) * 4
    vmem = 2 * (x_block + out_block) + 2 * w_bytes + interm
    vmem = int(min(max(int(1.5 * vmem), 8 << 20), 40 << 20))

    cost = pl.CostEstimate(
        flops=B * (L * 4 * C * HW * hid + 2 * C * HW * R + 2 * C * R * OC),
        transcendentals=B * (L * C + 1),
        bytes_accessed=int(xf.size * 4 + w_bytes + B * OC * R * 4),
    )

    def _full_spec(a):
        return pl.BlockSpec(a.shape, lambda b, n=a.ndim: (0,) * n)

    out = pl.pallas_call(
        mixvpr_kernel,
        out_shape=jax.ShapeDtypeStruct((B, R, OC), jnp.float32),
        grid_spec=pltpu.PrefetchScalarGridSpec(
            num_scalar_prefetch=0,
            grid=(B // TB,),
            in_specs=[pl.BlockSpec((TB, C, HW), lambda b: (b, 0, 0))]
                     + [_full_spec(a) for a in weights],
            out_specs=pl.BlockSpec((TB, R, OC), lambda b: (b, 0, 0)),
        ),
        compiler_params=pltpu.CompilerParams(
            dimension_semantics=("parallel",),
            vmem_limit_bytes=vmem),
        cost_estimate=cost,
    )(xf, *weights)

    # Lane-dense kernel output is (B, R, OC); PyTorch flattens as (B, OC, R).
    return out.transpose(0, 2, 1).reshape(B, OC * R)


def mixvpr_reference(x, params):
    """Pure-JAX f32 reference reproducing the PyTorch forward."""
    ln_g, ln_b, w1, b1, w2, b2, wc, bc, wr, br = params
    B, C, H, W = x.shape
    xf = x.reshape(B, C, H * W).astype(jnp.float32)
    L = w1.shape[0]
    for l in range(L):
        mu = jnp.mean(xf, axis=-1, keepdims=True)
        var = jnp.mean((xf - mu) ** 2, axis=-1, keepdims=True)
        y = (xf - mu) / jnp.sqrt(var + 1e-5) * ln_g[l] + ln_b[l]
        h = jnp.maximum(jnp.einsum('bch,hk->bck', y, w1[l]) + b1[l], 0.0)
        xf = xf + jnp.einsum('bck,kh->bch', h, w2[l]) + b2[l]
    t = jnp.einsum('bch,co->bho', xf, wc) + bc          # (B, HW, OC)
    r = jnp.einsum('bho,hr->bor', t, wr) + br           # (B, OC, R)
    flat = r.reshape(B, -1)
    nrm = jnp.maximum(jnp.linalg.norm(flat, axis=-1, keepdims=True), 1e-12)
    return flat / nrm


def init_params(key, in_channels, in_h, in_w, out_channels, mix_depth,
                mlp_ratio, out_rows):
    hw = in_h * in_w
    hid = int(hw * mlp_ratio)
    ks = jax.random.split(key, 8)
    std = 0.02
    # FeatureMixer params (stacked over depth).  LayerNorm init = (ones, zeros),
    # Linear weights trunc_normal(std=0.02) (approximated by clipped normal),
    # biases zero -- matching the module's __init__.
    ln_g = jnp.ones((mix_depth, 1, hw), jnp.float32)
    ln_b = jnp.zeros((mix_depth, 1, hw), jnp.float32)
    w1 = jnp.clip(jax.random.normal(ks[0], (mix_depth, hw, hid)) * std,
                  -2 * std, 2 * std).astype(jnp.float32)
    b1 = jnp.zeros((mix_depth, 1, hid), jnp.float32)
    w2 = jnp.clip(jax.random.normal(ks[1], (mix_depth, hid, hw)) * std,
                  -2 * std, 2 * std).astype(jnp.float32)
    b2 = jnp.zeros((mix_depth, 1, hw), jnp.float32)
    # channel_proj / row_proj (default nn.Linear init; deterministic normal here).
    wc = (jax.random.normal(ks[2], (in_channels, out_channels)) * std).astype(jnp.float32)
    bc = (jax.random.normal(ks[3], (1, out_channels)) * std).astype(jnp.float32)
    wr = (jax.random.normal(ks[4], (hw, out_rows)) * std).astype(jnp.float32)
    br = (jax.random.normal(ks[5], (1, out_rows)) * std).astype(jnp.float32)
    return (ln_g, ln_b, w1, b1, w2, b2, wc, bc, wr, br)


if __name__ == "__main__":
    # Small, module-consistent shapes.
    B, C, H, W = 2, 32, 4, 4          # in_channels=32, in_h=in_w=4 -> hw=16
    out_channels, mix_depth, mlp_ratio, out_rows = 16, 4, 1, 4

    key = jax.random.PRNGKey(0)
    kx, kp = jax.random.split(key)
    x = jax.random.normal(kx, (B, C, H, W), dtype=jnp.float32)
    params = init_params(kp, C, H, W, out_channels, mix_depth, mlp_ratio, out_rows)

    out = jax.block_until_ready(mixvpr_forward(x, params))
    ref = mixvpr_reference(x, params)

    assert out.shape == (B, out_channels * out_rows), out.shape
    # bf16 MXU operands (f32 accumulation) -> looser tolerance than a pure-f32 run.
    assert jnp.allclose(out, ref, atol=2e-2, rtol=2e-2), \
        float(jnp.max(jnp.abs(out - ref)))

    print("KERNEL_OK")
</pallas_src>

<mosaic_0001>
module attributes {stable_mosaic.version = 11 : i64} {
  func.func @mixvpr_kernel(%arg0: i32, %arg1: memref<1x32x16xf32, #tpu.memory_space<vmem>>, %arg2: memref<4x1x16xf32, #tpu.memory_space<vmem>>, %arg3: memref<4x1x16xf32, #tpu.memory_space<vmem>>, %arg4: memref<4x16x16xbf16, #tpu.memory_space<vmem>>, %arg5: memref<4x1x16xf32, #tpu.memory_space<vmem>>, %arg6: memref<4x16x16xbf16, #tpu.memory_space<vmem>>, %arg7: memref<4x1x16xf32, #tpu.memory_space<vmem>>, %arg8: memref<16x4xbf16, #tpu.memory_space<vmem>>, %arg9: memref<32x16xbf16, #tpu.memory_space<vmem>>, %arg10: memref<4x16xf32, #tpu.memory_space<vmem>>, %arg11: memref<1x4x16xf32, #tpu.memory_space<vmem>>) attributes {dimension_semantics = [#tpu.dimension_semantics<parallel>], iteration_bounds = array<i64: 2>, scalar_prefetch = 0 : i64, scratch_operands = 0 : i64, tpu.core_type = #tpu.core_type<tc>, window_params = [{transform_indices = @transform_0, window_bounds = array<i64: 1, 32, 16>}, {pipeline_mode = #tpu.pipeline_mode<synchronous>, transform_indices = @transform_1, window_bounds = array<i64: 4, 1, 16>}, {pipeline_mode = #tpu.pipeline_mode<synchronous>, transform_indices = @transform_2, window_bounds = array<i64: 4, 1, 16>}, {pipeline_mode = #tpu.pipeline_mode<synchronous>, transform_indices = @transform_3, window_bounds = array<i64: 4, 16, 16>}, {pipeline_mode = #tpu.pipeline_mode<synchronous>, transform_indices = @transform_4, window_bounds = array<i64: 4, 1, 16>}, {pipeline_mode = #tpu.pipeline_mode<synchronous>, transform_indices = @transform_5, window_bounds = array<i64: 4, 16, 16>}, {pipeline_mode = #tpu.pipeline_mode<synchronous>, transform_indices = @transform_6, window_bounds = array<i64: 4, 1, 16>}, {pipeline_mode = #tpu.pipeline_mode<synchronous>, transform_indices = @transform_7, window_bounds = array<i64: 16, 4>}, {pipeline_mode = #tpu.pipeline_mode<synchronous>, transform_indices = @transform_8, window_bounds = array<i64: 32, 16>}, {pipeline_mode = #tpu.pipeline_mode<synchronous>, transform_indices = @transform_9, window_bounds = array<i64: 4, 16>}, {transform_indices = @transform_10, window_bounds = array<i64: 1, 4, 16>}]} {
    %c0 = arith.constant 0 : index
    %c0_0 = arith.constant 0 : index
    %c0_1 = arith.constant 0 : index
    %0 = vector.load %arg1[%c0, %c0_0, %c0_1] : memref<1x32x16xf32, #tpu.memory_space<vmem>>, vector<1x32x16xf32>
    %1 = vector.shape_cast %0 : vector<1x32x16xf32> to vector<32x16xf32>
    %c0_i32 = arith.constant 0 : i32
    %c4_i32 = arith.constant 4 : i32
    %2 = arith.addi %c0_i32, %c4_i32 : i32
    %c1_i32 = arith.constant 1 : i32
    %3 = scf.for %arg12 = %c0_i32 to %2 step %c1_i32 iter_args(%arg13 = %1) -> (vector<32x16xf32>)  : i32 {
      %cst_15 = arith.constant dense<0.000000e+00> : vector<32xf32>
      %26 = vector.multi_reduction <add>, %arg13, %cst_15 [1] : vector<32x16xf32> to vector<32xf32>
      %27 = vector.shape_cast %26 : vector<32xf32> to vector<32x1xf32>
      %cst_16 = arith.constant 1.600000e+01 : f32
      %28 = vector.broadcast %cst_16 : f32 to vector<32x1xf32>
      %29 = arith.divf %27, %28 : vector<32x1xf32>
      %30 = vector.broadcast %29 : vector<32x1xf32> to vector<32x16xf32>
      %31 = arith.subf %arg13, %30 : vector<32x16xf32>
      %32 = arith.mulf %31, %31 : vector<32x16xf32>
      %cst_17 = arith.constant dense<0.000000e+00> : vector<32xf32>
      %33 = vector.multi_reduction <add>, %32, %cst_17 [1] : vector<32x16xf32> to vector<32xf32>
      %34 = vector.shape_cast %33 : vector<32xf32> to vector<32x1xf32>
      %cst_18 = arith.constant 1.600000e+01 : f32
      %35 = vector.broadcast %cst_18 : f32 to vector<32x1xf32>
      %36 = arith.divf %34, %35 : vector<32x1xf32>
      %cst_19 = arith.constant 9.99999974E-6 : f32
      %37 = vector.broadcast %cst_19 : f32 to vector<32x1xf32>
      %38 = arith.addf %36, %37 : vector<32x1xf32>
      %39 = math.rsqrt %38 : vector<32x1xf32>
      %40 = vector.broadcast %39 : vector<32x1xf32> to vector<32x16xf32>
      %41 = arith.mulf %31, %40 : vector<32x16xf32>
      %42 = arith.index_cast %arg12 : i32 to index
      %c0_20 = arith.constant 0 : index
      %c0_21 = arith.constant 0 : index
      %43 = vector.load %arg2[%42, %c0_20, %c0_21] : memref<4x1x16xf32, #tpu.memory_space<vmem>>, vector<1x1x16xf32>
      %44 = vector.shape_cast %43 : vector<1x1x16xf32> to vector<1x16xf32>
      %45 = vector.broadcast %44 : vector<1x16xf32> to vector<32x16xf32>
      %46 = arith.mulf %41, %45 : vector<32x16xf32>
      %47 = arith.index_cast %arg12 : i32 to index
      %c0_22 = arith.constant 0 : index
      %c0_23 = arith.constant 0 : index
      %48 = vector.load %arg3[%47, %c0_22, %c0_23] : memref<4x1x16xf32, #tpu.memory_space<vmem>>, vector<1x1x16xf32>
      %49 = vector.shape_cast %48 : vector<1x1x16xf32> to vector<1x16xf32>
      %50 = vector.broadcast %49 : vector<1x16xf32> to vector<32x16xf32>
      %51 = arith.addf %46, %50 : vector<32x16xf32>
      %52 = arith.truncf %51 : vector<32x16xf32> to vector<32x16xbf16>
      %53 = arith.index_cast %arg12 : i32 to index
      %c0_24 = arith.constant 0 : index
      %c0_25 = arith.constant 0 : index
      %54 = vector.load %arg4[%53, %c0_24, %c0_25] : memref<4x16x16xbf16, #tpu.memory_space<vmem>>, vector<1x16x16xbf16>
      %55 = vector.shape_cast %54 : vector<1x16x16xbf16> to vector<16x16xbf16>
      %cst_26 = arith.constant dense<0.000000e+00> : vector<32x16xf32>
      %56 = tpu.matmul %52, %55, %cst_26 {dimension_numbers = #tpu.dot_dimension_numbers<[1], [0], [0], [1], [0, 0, 1, 1], [], []>} : vector<32x16xbf16>, vector<16x16xbf16>, vector<32x16xf32> -> vector<32x16xf32>
      %57 = arith.index_cast %arg12 : i32 to index
      %c0_27 = arith.constant 0 : index
      %c0_28 = arith.constant 0 : index
      %58 = vector.load %arg5[%57, %c0_27, %c0_28] : memref<4x1x16xf32, #tpu.memory_space<vmem>>, vector<1x1x16xf32>
      %59 = vector.shape_cast %58 : vector<1x1x16xf32> to vector<1x16xf32>
      %60 = vector.broadcast %59 : vector<1x16xf32> to vector<32x16xf32>
      %61 = arith.addf %56, %60 : vector<32x16xf32>
      %cst_29 = arith.constant 0.000000e+00 : f32
      %62 = vector.broadcast %cst_29 : f32 to vector<32x16xf32>
      %63 = arith.maximumf %61, %62 : vector<32x16xf32>
      %64 = arith.truncf %63 : vector<32x16xf32> to vector<32x16xbf16>
      %65 = arith.index_cast %arg12 : i32 to index
      %c0_30 = arith.constant 0 : index
      %c0_31 = arith.constant 0 : index
      %66 = vector.load %arg6[%65, %c0_30, %c0_31] : memref<4x16x16xbf16, #tpu.memory_space<vmem>>, vector<1x16x16xbf16>
      %67 = vector.shape_cast %66 : vector<1x16x16xbf16> to vector<16x16xbf16>
      %cst_32 = arith.constant dense<0.000000e+00> : vector<32x16xf32>
      %68 = tpu.matmul %64, %67, %cst_32 {dimension_numbers = #tpu.dot_dimension_numbers<[1], [0], [0], [1], [0, 0, 1, 1], [], []>} : vector<32x16xbf16>, vector<16x16xbf16>, vector<32x16xf32> -> vector<32x16xf32>
      %69 = arith.index_cast %arg12 : i32 to index
      %c0_33 = arith.constant 0 : index
      %c0_34 = arith.constant 0 : index
      %70 = vector.load %arg7[%69, %c0_33, %c0_34] : memref<4x1x16xf32, #tpu.memory_space<vmem>>, vector<1x1x16xf32>
      %71 = vector.shape_cast %70 : vector<1x1x16xf32> to vector<1x16xf32>
      %72 = vector.broadcast %71 : vector<1x16xf32> to vector<32x16xf32>
      %73 = arith.addf %68, %72 : vector<32x16xf32>
      %74 = arith.addf %arg13, %73 : vector<32x16xf32>
      scf.yield %74 : vector<32x16xf32>
    }
    %c4_i32_2 = arith.constant 4 : i32
    %4 = arith.truncf %3 : vector<32x16xf32> to vector<32x16xbf16>
    %c0_3 = arith.constant 0 : index
    %c0_4 = arith.constant 0 : index
    %5 = vector.load %arg8[%c0_3, %c0_4] : memref<16x4xbf16, #tpu.memory_space<vmem>>, vector<16x4xbf16>
    %cst = arith.constant dense<0.000000e+00> : vector<32x4xf32>
    %6 = tpu.matmul %4, %5, %cst {dimension_numbers = #tpu.dot_dimension_numbers<[1], [0], [0], [1], [0, 0, 1, 1], [], []>} : vector<32x16xbf16>, vector<16x4xbf16>, vector<32x4xf32> -> vector<32x4xf32>
    %7 = vector.shape_cast %6 : vector<32x4xf32> to vector<1x32x4xf32>
    %8 = arith.truncf %7 : vector<1x32x4xf32> to vector<1x32x4xbf16>
    %c0_5 = arith.constant 0 : index
    %c0_6 = arith.constant 0 : index
    %9 = vector.load %arg9[%c0_5, %c0_6] : memref<32x16xbf16, #tpu.memory_space<vmem>>, vector<32x16xbf16>
    %c0_7 = arith.constant 0 : index
    %c0_8 = arith.constant 0 : index
    %10 = vector.load %arg10[%c0_7, %c0_8] : memref<4x16xf32, #tpu.memory_space<vmem>>, vector<4x16xf32>
    %11 = vector.shape_cast %8 : vector<1x32x4xbf16> to vector<32x4xbf16>
    %cst_9 = arith.constant dense<0.000000e+00> : vector<4x16xf32>
    %12 = tpu.matmul %11, %9, %cst_9 {dimension_numbers = #tpu.dot_dimension_numbers<[0], [0], [1], [1], [0, 1, 1, 1], [], []>} : vector<32x4xbf16>, vector<32x16xbf16>, vector<4x16xf32> -> vector<4x16xf32>
    %13 = arith.addf %12, %10 : vector<4x16xf32>
    %14 = arith.mulf %13, %13 : vector<4x16xf32>
    %15 = vector.shape_cast %14 : vector<4x16xf32> to vector<1x4x16xf32>
    %cst_10 = arith.constant dense<0.000000e+00> : vector<1xf32>
    %16 = vector.multi_reduction <add>, %15, %cst_10 [1, 2] : vector<1x4x16xf32> to vector<1xf32>
    %17 = vector.shape_cast %16 : vector<1xf32> to vector<1x1x1xf32>
    %18 = vector.extract %17[0, 0, 0] : f32 from vector<1x1x1xf32>
    %cst_11 = arith.constant 1.000000e-24 : f32
    %19 = arith.maximumf %18, %cst_11 : f32
    %20 = math.rsqrt %19 : f32
    %21 = vector.broadcast %20 : f32 to vector<4x16xf32>
    %22 = arith.mulf %13, %21 : vector<4x16xf32>
    %c0_12 = arith.constant 0 : index
    %c0_13 = arith.constant 0 : index
    %c0_14 = arith.constant 0 : index
    %23 = vector.load %arg11[%c0_12, %c0_13, %c0_14] : memref<1x4x16xf32, #tpu.memory_space<vmem>>, vector<1x4x16xf32>
    %24 = vector.shape_cast %23 : vector<1x4x16xf32> to vector<4x16xf32>
    %25 = vector.shape_cast %22 : vector<4x16xf32> to vector<1x4x16xf32>
    tpu.vector_store %arg11[%c0_12, %c0_13, %c0_14], %25 {strides = array<i32>} : memref<1x4x16xf32, #tpu.memory_space<vmem>>, vector<1x4x16xf32>,
    return
  }
  func.func @transform_0(%arg0: i32) -> (i32, i32, i32) {
    %c0_i32 = arith.constant 0 : i32
    %c0_i32_0 = arith.constant 0 : i32
    %c0_i32_1 = arith.constant 0 : i32
    return %arg0, %c0_i32, %c0_i32_0 : i32, i32, i32
  }
  func.func @transform_1(%arg0: i32) -> (i32, i32, i32) {
    %c0_i32 = arith.constant 0 : i32
    %c0_i32_0 = arith.constant 0 : i32
    %c0_i32_1 = arith.constant 0 : i32
    %c0_i32_2 = arith.constant 0 : i32
    return %c0_i32, %c0_i32_0, %c0_i32_1 : i32, i32, i32
  }
  func.func @transform_2(%arg0: i32) -> (i32, i32, i32) {
    %c0_i32 = arith.constant 0 : i32
    %c0_i32_0 = arith.constant 0 : i32
    %c0_i32_1 = arith.constant 0 : i32
    %c0_i32_2 = arith.constant 0 : i32
    return %c0_i32, %c0_i32_0, %c0_i32_1 : i32, i32, i32
  }
  func.func @transform_3(%arg0: i32) -> (i32, i32, i32) {
    %c0_i32 = arith.constant 0 : i32
    %c0_i32_0 = arith.constant 0 : i32
    %c0_i32_1 = arith.constant 0 : i32
    %c0_i32_2 = arith.constant 0 : i32
    return %c0_i32, %c0_i32_0, %c0_i32_1 : i32, i32, i32
  }
  func.func @transform_4(%arg0: i32) -> (i32, i32, i32) {
    %c0_i32 = arith.constant 0 : i32
    %c0_i32_0 = arith.constant 0 : i32
    %c0_i32_1 = arith.constant 0 : i32
    %c0_i32_2 = arith.constant 0 : i32
    return %c0_i32, %c0_i32_0, %c0_i32_1 : i32, i32, i32
  }
  func.func @transform_5(%arg0: i32) -> (i32, i32, i32) {
    %c0_i32 = arith.constant 0 : i32
    %c0_i32_0 = arith.constant 0 : i32
    %c0_i32_1 = arith.constant 0 : i32
    %c0_i32_2 = arith.constant 0 : i32
    return %c0_i32, %c0_i32_0, %c0_i32_1 : i32, i32, i32
  }
  func.func @transform_6(%arg0: i32) -> (i32, i32, i32) {
    %c0_i32 = arith.constant 0 : i32
    %c0_i32_0 = arith.constant 0 : i32
    %c0_i32_1 = arith.constant 0 : i32
    %c0_i32_2 = arith.constant 0 : i32
    return %c0_i32, %c0_i32_0, %c0_i32_1 : i32, i32, i32
  }
  func.func @transform_7(%arg0: i32) -> (i32, i32) {
    %c0_i32 = arith.constant 0 : i32
    %c0_i32_0 = arith.constant 0 : i32
    %c0_i32_1 = arith.constant 0 : i32
    return %c0_i32, %c0_i32_0 : i32, i32
  }
  func.func @transform_8(%arg0: i32) -> (i32, i32) {
    %c0_i32 = arith.constant 0 : i32
    %c0_i32_0 = arith.constant 0 : i32
    %c0_i32_1 = arith.constant 0 : i32
    return %c0_i32, %c0_i32_0 : i32, i32
  }
  func.func @transform_9(%arg0: i32) -> (i32, i32) {
    %c0_i32 = arith.constant 0 : i32
    %c0_i32_0 = arith.constant 0 : i32
    %c0_i32_1 = arith.constant 0 : i32
    return %c0_i32, %c0_i32_0 : i32, i32
  }
  func.func @transform_10(%arg0: i32) -> (i32, i32, i32) {
    %c0_i32 = arith.constant 0 : i32
    %c0_i32_0 = arith.constant 0 : i32
    %c0_i32_1 = arith.constant 0 : i32
    return %arg0, %c0_i32, %c0_i32_0 : i32, i32, i32
  }
}

</mosaic_0001>

<llo_original>
// kernel: tpu_custom_call.1
$region0: #{tpu_custom_call.1}
  #allocation0 [shape = 'u32[]', space=smem, size = 0x4, offset = 0x4, fixed_abs, tag = 'smem constant byte address 0x4 - core index']
  #allocation1 [shape = 'u32[144,128]{1,0:T(1,128)}', space=vmem, size = 0x12000, scoped, tag = 'internal scratch']
  %s0 = inlined_call_operand.vmem [shape: f32[2,32,16], index: 0, kind: input, shape index: {}]
  %s1 = inlined_call_operand.vmem [shape: f32[4,1,16], index: 1, kind: input, shape index: {}]
  %s2 = inlined_call_operand.vmem [shape: f32[4,1,16], index: 2, kind: input, shape index: {}]
  %s3 = inlined_call_operand.vmem [shape: bf16[4,16,16], index: 3, kind: input, shape index: {}]
  %s4 = inlined_call_operand.vmem [shape: f32[4,1,16], index: 4, kind: input, shape index: {}]
  %s5 = inlined_call_operand.vmem [shape: bf16[4,16,16], index: 5, kind: input, shape index: {}]
  %s6 = inlined_call_operand.vmem [shape: f32[4,1,16], index: 6, kind: input, shape index: {}]
  %s7 = inlined_call_operand.vmem [shape: bf16[16,4], index: 7, kind: input, shape index: {}]
  %s8 = inlined_call_operand.vmem [shape: bf16[32,16], index: 8, kind: input, shape index: {}]
  %s9 = inlined_call_operand.vmem [shape: f32[4,16], index: 9, kind: input, shape index: {}]
  %s10 = inlined_call_operand.hbm [shape: f32[2,4,16], index: 10, kind: output, shape index: {}]
  %s11 = sld [smem:[#allocation0]]
  $region80: #{tpu_custom_call.1} parent=0
    _
  %s13 = ssub.s32 1, %s11
  %s14 = scalar_select 0, %s13, %s11
  $region1: #{tpu_custom_call.1} parent=0
    #allocation2 [shape = 'u8[4096]{0}', space=vmem, size = 0x1000, scoped, tag = 'output window, operand 0']
    #allocation3 [shape = 's32[2]{0}', space=sflag, size = 0x8, scoped, tag = 'scoped memory for tpu_custom_call.1']
    %15 = vsyncpa [#allocation3], 0
    %s16 = scalar_lea.sflag [#allocation3], 1
    %17 = vsyncpa %s16, 0
    loop: start=0, step=1, limit=4
    $region2: #{tpu_custom_call.1} parent=1 // loop_pre_header
      _
    $region3: #{tpu_custom_call.1} parent=1 // loop_header
      %s19 = sphi 0, %s23
      %p20 = scmp.ge.s32.totalorder %s19, 4
      %s29 = sphi 0, %s31
      %s32 = sphi 0, %s29
      %s33 = sphi 0, %s32
      %s49 = sphi 0, %s33
      %s53 = sphi 0, %s53
      %s55 = sphi 0, %s53
      %s56 = sphi 0, %s55
      %s70 = sphi 0, %s56
      %s74 = sphi 0, %s74
      %s76 = sphi 0, %s74
      %s77 = sphi 0, %s76
      %s91 = sphi 0, %s77
      %s95 = sphi 0, %s95
      %s97 = sphi 0, %s95
      %s98 = sphi 0, %s97
      %s112 = sphi 0, %s98
      %s116 = sphi 0, %s116
      %s118 = sphi 0, %s116
      %s119 = sphi 0, %s118
      %s133 = sphi 0, %s119
      %s137 = sphi 0, %s137
      %s139 = sphi 0, %s137
      %s140 = sphi 0, %s139
      %s154 = sphi 0, %s140
      %s158 = sphi 0, %s158
      %s160 = sphi 0, %s158
      %s161 = sphi 0, %s160
      %s175 = sphi 0, %s161
      %s179 = sphi 0, %s179
      %s181 = sphi 0, %s179
      %s182 = sphi 0, %s181
      %s196 = sphi 0, %s182
      %s200 = sphi 0, %s200
      %s202 = sphi 0, %s200
      %s203 = sphi 0, %s202
      %s217 = sphi 0, %s203
      %s221 = sphi 0, %s221
      %s223 = sphi 0, %s221
      %s224 = sphi 0, %s223
      %s238 = sphi 0, %s224
      %s244 = sphi 0, %s246
      %s247 = sphi 0, %s244
      %s248 = sphi 0, %s247
      %s264 = sphi 0, %s248
    $region4: #{tpu_custom_call.1} parent=1 // loop_header_branch
      %22 = sbr.rel (%p20) target = $region8
    $region5: #{tpu_custom_call.1} parent=1 // loop_body
      %s24 = ssub.s32 %s19, 1
      %s25 = ssub.s32 %s19, 2
      %s26 = sadd.s32 %s19, 1
      %s27 = ssub.s32 %s19, %s26
      %p28 = scmp.eq.s32.totalorder %s27, 0
      %s30 = sadd.s32 %s29, 1
      %s31 = scalar_select %p28, %s29, %s30
      %p34 = pneg %p28
      %p35 = scmp.eq.s32.totalorder %s19, 1
      %p36 = por %p34, %p35
      %p37 = scmp.ne.s32.totalorder %s29, %s32
      %p38 = scmp.eq.s32.totalorder %s19, 0
      %p39 = por %p37, %p38
      %p40 = scmp.ne.s32.totalorder %s29, %s32
      %p41 = scmp.eq.s32.totalorder %s24, 1
      %p42 = por %p40, %p41
      %p43 = scmp.ne.s32.totalorder %s32, %s33
      %p44 = scmp.eq.s32.totalorder %s24, 0
      %p45 = por %p43, %p44
      %p46 = scmp.ne.s32.totalorder %s32, %s33
      %p47 = scmp.eq.s32.totalorder %s25, 1
      %p48 = por %p46, %p47
      %p50 = scmp.ne.s32.totalorder %s33, %s49
      %p51 = scmp.eq.s32.totalorder %s25, 0
      %p52 = por %p50, %p51
      %s54 = sadd.s32 %s53, 1
      %p57 = scmp.eq.s32.totalorder %s19, 1
      %p58 = scmp.ne.s32.totalorder %s53, %s55
      %p59 = scmp.eq.s32.totalorder %s19, 0
      %p60 = por %p58, %p59
      %p61 = scmp.ne.s32.totalorder %s53, %s55
      %p62 = scmp.eq.s32.totalorder %s24, 1
      %p63 = por %p61, %p62
      %p64 = scmp.ne.s32.totalorder %s55, %s56
      %p65 = scmp.eq.s32.totalorder %s24, 0
      %p66 = por %p64, %p65
      %p67 = scmp.ne.s32.totalorder %s55, %s56
      %p68 = scmp.eq.s32.totalorder %s25, 1
      %p69 = por %p67, %p68
      %p71 = scmp.ne.s32.totalorder %s56, %s70
      %p72 = scmp.eq.s32.totalorder %s25, 0
      %p73 = por %p71, %p72
      %s75 = sadd.s32 %s74, 1
      %p78 = scmp.eq.s32.totalorder %s19, 1
      %p79 = scmp.ne.s32.totalorder %s74, %s76
      %p80 = scmp.eq.s32.totalorder %s19, 0
      %p81 = por %p79, %p80
      %p82 = scmp.ne.s32.totalorder %s74, %s76
      %p83 = scmp.eq.s32.totalorder %s24, 1
      %p84 = por %p82, %p83
      %p85 = scmp.ne.s32.totalorder %s76, %s77
      %p86 = scmp.eq.s32.totalorder %s24, 0
      %p87 = por %p85, %p86
      %p88 = scmp.ne.s32.totalorder %s76, %s77
      %p89 = scmp.eq.s32.totalorder %s25, 1
      %p90 = por %p88, %p89
      %p92 = scmp.ne.s32.totalorder %s77, %s91
      %p93 = scmp.eq.s32.totalorder %s25, 0
      %p94 = por %p92, %p93
      %s96 = sadd.s32 %s95, 1
      %p99 = scmp.eq.s32.totalorder %s19, 1
      %p100 = scmp.ne.s32.totalorder %s95, %s97
      %p101 = scmp.eq.s32.totalorder %s19, 0
      %p102 = por %p100, %p101
      %p103 = scmp.ne.s32.totalorder %s95, %s97
      %p104 = scmp.eq.s32.totalorder %s24, 1
      %p105 = por %p103, %p104
      %p106 = scmp.ne.s32.totalorder %s97, %s98
      %p107 = scmp.eq.s32.totalorder %s24, 0
      %p108 = por %p106, %p107
      %p109 = scmp.ne.s32.totalorder %s97, %s98
      %p110 = scmp.eq.s32.totalorder %s25, 1
      %p111 = por %p109, %p110
      %p113 = scmp.ne.s32.totalorder %s98, %s112
      %p114 = scmp.eq.s32.totalorder %s25, 0
      %p115 = por %p113, %p114
      %s117 = sadd.s32 %s116, 1
      %p120 = scmp.eq.s32.totalorder %s19, 1
      %p121 = scmp.ne.s32.totalorder %s116, %s118
      %p122 = scmp.eq.s32.totalorder %s19, 0
      %p123 = por %p121, %p122
      %p124 = scmp.ne.s32.totalorder %s116, %s118
      %p125 = scmp.eq.s32.totalorder %s24, 1
      %p126 = por %p124, %p125
      %p127 = scmp.ne.s32.totalorder %s118, %s119
      %p128 = scmp.eq.s32.totalorder %s24, 0
      %p129 = por %p127, %p128
      %p130 = scmp.ne.s32.totalorder %s118, %s119
      %p131 = scmp.eq.s32.totalorder %s25, 1
      %p132 = por %p130, %p131
      %p134 = scmp.ne.s32.totalorder %s119, %s133
      %p135 = scmp.eq.s32.totalorder %s25, 0
      %p136 = por %p134, %p135
      %s138 = sadd.s32 %s137, 1
      %p141 = scmp.eq.s32.totalorder %s19, 1
      %p142 = scmp.ne.s32.totalorder %s137, %s139
      %p143 = scmp.eq.s32.totalorder %s19, 0
      %p144 = por %p142, %p143
      %p145 = scmp.ne.s32.totalorder %s137, %s139
      %p146 = scmp.eq.s32.totalorder %s24, 1
      %p147 = por %p145, %p146
      %p148 = scmp.ne.s32.totalorder %s139, %s140
      %p149 = scmp.eq.s32.totalorder %s24, 0
      %p150 = por %p148, %p149
      %p151 = scmp.ne.s32.totalorder %s139, %s140
      %p152 = scmp.eq.s32.totalorder %s25, 1
      %p153 = por %p151, %p152
      %p155 = scmp.ne.s32.totalorder %s140, %s154
      %p156 = scmp.eq.s32.totalorder %s25, 0
      %p157 = por %p155, %p156
      %s159 = sadd.s32 %s158, 1
      %p162 = scmp.eq.s32.totalorder %s19, 1
      %p163 = scmp.ne.s32.totalorder %s158, %s160
      %p164 = scmp.eq.s32.totalorder %s19, 0
      %p165 = por %p163, %p164
      %p166 = scmp.ne.s32.totalorder %s158, %s160
      %p167 = scmp.eq.s32.totalorder %s24, 1
      %p168 = por %p166, %p167
      %p169 = scmp.ne.s32.totalorder %s160, %s161
      %p170 = scmp.eq.s32.totalorder %s24, 0
      %p171 = por %p169, %p170
      %p172 = scmp.ne.s32.totalorder %s160, %s161
      %p173 = scmp.eq.s32.totalorder %s25, 1
      %p174 = por %p172, %p173
      %p176 = scmp.ne.s32.totalorder %s161, %s175
      %p177 = scmp.eq.s32.totalorder %s25, 0
      %p178 = por %p176, %p177
      %s180 = sadd.s32 %s179, 1
      %p183 = scmp.eq.s32.totalorder %s19, 1
      %p184 = scmp.ne.s32.totalorder %s179, %s181
      %p185 = scmp.eq.s32.totalorder %s19, 0
      %p186 = por %p184, %p185
      %p187 = scmp.ne.s32.totalorder %s179, %s181
      %p188 = scmp.eq.s32.totalorder %s24, 1
      %p189 = por %p187, %p188
      %p190 = scmp.ne.s32.totalorder %s181, %s182
      %p191 = scmp.eq.s32.totalorder %s24, 0
      %p192 = por %p190, %p191
      %p193 = scmp.ne.s32.totalorder %s181, %s182
      %p194 = scmp.eq.s32.totalorder %s25, 1
      %p195 = por %p193, %p194
      %p197 = scmp.ne.s32.totalorder %s182, %s196
      %p198 = scmp.eq.s32.totalorder %s25, 0
      %p199 = por %p197, %p198
      %s201 = sadd.s32 %s200, 1
      %p204 = scmp.eq.s32.totalorder %s19, 1
      %p205 = scmp.ne.s32.totalorder %s200, %s202
      %p206 = scmp.eq.s32.totalorder %s19, 0
      %p207 = por %p205, %p206
      %p208 = scmp.ne.s32.totalorder %s200, %s202
      %p209 = scmp.eq.s32.totalorder %s24, 1
      %p210 = por %p208, %p209
      %p211 = scmp.ne.s32.totalorder %s202, %s203
      %p212 = scmp.eq.s32.totalorder %s24, 0
      %p213 = por %p211, %p212
      %p214 = scmp.ne.s32.totalorder %s202, %s203
      %p215 = scmp.eq.s32.totalorder %s25, 1
      %p216 = por %p214, %p215
      %p218 = scmp.ne.s32.totalorder %s203, %s217
      %p219 = scmp.eq.s32.totalorder %s25, 0
      %p220 = por %p218, %p219
      %s222 = sadd.s32 %s221, 1
      %p225 = scmp.eq.s32.totalorder %s19, 1
      %p226 = scmp.ne.s32.totalorder %s221, %s223
      %p227 = scmp.eq.s32.totalorder %s19, 0
      %p228 = por %p226, %p227
      %p229 = scmp.ne.s32.totalorder %s221, %s223
      %p230 = scmp.eq.s32.totalorder %s24, 1
      %p231 = por %p229, %p230
      %p232 = scmp.ne.s32.totalorder %s223, %s224
      %p233 = scmp.eq.s32.totalorder %s24, 0
      %p234 = por %p232, %p233
      %p235 = scmp.ne.s32.totalorder %s223, %s224
      %p236 = scmp.eq.s32.totalorder %s25, 1
      %p237 = por %p235, %p236
      %p239 = scmp.ne.s32.totalorder %s224, %s238
      %p240 = scmp.eq.s32.totalorder %s25, 0
      %p241 = por %p239, %p240
      %s242 = ssub.s32 %s19, %s26
      %p243 = scmp.eq.s32.totalorder %s242, 0
      %s245 = sadd.s32 %s244, 1
      %s246 = scalar_select %p243, %s244, %s245
      %p249 = pneg %p243
      %p250 = scmp.eq.s32.totalorder %s19, 1
      %p251 = por %p249, %p250
      %p252 = scmp.ne.s32.totalorder %s244, %s247
      %p253 = scmp.eq.s32.totalorder %s19, 0
      %p254 = por %p252, %p253
      %p255 = scmp.ne.s32.totalorder %s244, %s247
      %p256 = scmp.eq.s32.totalorder %s24, 1
      %p257 = por %p255, %p256
      %p258 = scmp.ne.s32.totalorder %s247, %s248
      %p259 = scmp.eq.s32.totalorder %s24, 0
      %p260 = por %p258, %p259
      %p261 = scmp.ne.s32.totalorder %s247, %s248
      %p262 = scmp.eq.s32.totalorder %s25, 1
      %p263 = por %p261, %p262
      %p265 = scmp.ne.s32.totalorder %s248, %s264
      %p266 = scmp.eq.s32.totalorder %s25, 0
      %p267 = por %p265, %p266
      %p268 = scmp.le.s32.totalorder 1, %s19
      %p269 = scmp.lt.s32.totalorder %s19, 3
      %p270 = pnand %p268, %p269
      %p271 = pneg %p270
      // Predicated region
      $region9: #{tpu_custom_call.1} parent=5 // pred_check
        _
      $region10: #{tpu_custom_call.1} parent=5 // pred_check_branch
        %273 = sbr.rel (%p270) target = $region12
      $region11: #{tpu_custom_call.1} parent=5 // pred_region
        %s274 = ssub.s32 %s19, 1
        // Predicated region
        $region13: #{tpu_custom_call.1} parent=11 // pred_check
          %p275 = pneg %p66
        $region14: #{tpu_custom_call.1} parent=11 // pred_check_branch
          %277 = sbr.rel (%p275) target = $region16
        $region15: #{tpu_custom_call.1} parent=11 // pred_region
          _
        $region16: #{tpu_custom_call.1} parent=11 // pred_fallthru
          _
        // Predicated region
        $region17: #{tpu_custom_call.1} parent=11 // pred_check
          %p278 = pneg %p87
        $region18: #{tpu_custom_call.1} parent=11 // pred_check_branch
          %280 = sbr.rel (%p278) target = $region20
        $region19: #{tpu_custom_call.1} parent=11 // pred_region
          _
        $region20: #{tpu_custom_call.1} parent=11 // pred_fallthru
          _
        // Predicated region
        $region21: #{tpu_custom_call.1} parent=11 // pred_check
          %p281 = pneg %p108
        $region22: #{tpu_custom_call.1} parent=11 // pred_check_branch
          %283 = sbr.rel (%p281) target = $region24
        $region23: #{tpu_custom_call.1} parent=11 // pred_region
          _
        $region24: #{tpu_custom_call.1} parent=11 // pred_fallthru
          _
        // Predicated region
        $region25: #{tpu_custom_call.1} parent=11 // pred_check
          %p284 = pneg %p129
        $region26: #{tpu_custom_call.1} parent=11 // pred_check_branch
          %286 = sbr.rel (%p284) target = $region28
        $region27: #{tpu_custom_call.1} parent=11 // pred_region
          _
        $region28: #{tpu_custom_call.1} parent=11 // pred_fallthru
          _
        // Predicated region
        $region29: #{tpu_custom_call.1} parent=11 // pred_check
          %p287 = pneg %p150
        $region30: #{tpu_custom_call.1} parent=11 // pred_check_branch
          %289 = sbr.rel (%p287) target = $region32
        $region31: #{tpu_custom_call.1} parent=11 // pred_region
          _
        $region32: #{tpu_custom_call.1} parent=11 // pred_fallthru
          _
        // Predicated region
        $region33: #{tpu_custom_call.1} parent=11 // pred_check
          %p290 = pneg %p171
        $region34: #{tpu_custom_call.1} parent=11 // pred_check_branch
          %292 = sbr.rel (%p290) target = $region36
        $region35: #{tpu_custom_call.1} parent=11 // pred_region
          _
        $region36: #{tpu_custom_call.1} parent=11 // pred_fallthru
          _
        // Predicated region
        $region37: #{tpu_custom_call.1} parent=11 // pred_check
          %p293 = pneg %p192
        $region38: #{tpu_custom_call.1} parent=11 // pred_check_branch
          %295 = sbr.rel (%p293) target = $region40
        $region39: #{tpu_custom_call.1} parent=11 // pred_region
          _
        $region40: #{tpu_custom_call.1} parent=11 // pred_fallthru
          _
        // Predicated region
        $region41: #{tpu_custom_call.1} parent=11 // pred_check
          %p296 = pneg %p213
        $region42: #{tpu_custom_call.1} parent=11 // pred_check_branch
          %298 = sbr.rel (%p296) target = $region44
        $region43: #{tpu_custom_call.1} parent=11 // pred_region
          _
        $region44: #{tpu_custom_call.1} parent=11 // pred_fallthru
          _
        // Predicated region
        $region45: #{tpu_custom_call.1} parent=11 // pred_check
          %p299 = pneg %p234
        $region46: #{tpu_custom_call.1} parent=11 // pred_check_branch
          %301 = sbr.rel (%p299) target = $region48
        $region47: #{tpu_custom_call.1} parent=11 // pred_region
          _
        $region48: #{tpu_custom_call.1} parent=11 // pred_fallthru
          _
      $region12: #{tpu_custom_call.1} parent=5 // pred_fallthru
        _
      %p302 = scmp.lt.s32.totalorder %s19, 2
      // Predicated region
      $region49: #{tpu_custom_call.1} parent=5 // pred_check
        %p303 = pneg %p302
      $region50: #{tpu_custom_call.1} parent=5 // pred_check_branch
        %305 = sbr.rel (%p303) target = $region52
      $region51: #{tpu_custom_call.1} parent=5 // pred_region
        // Predicated region
        $region53: #{tpu_custom_call.1} parent=51 // pred_check
          %p306 = pneg %p39
        $region54: #{tpu_custom_call.1} parent=51 // pred_check_branch
          %308 = sbr.rel (%p306) target = $region56
        $region55: #{tpu_custom_call.1} parent=51 // pred_region
          %p309 = scmp.lt.s32.totalorder %s19, 1
          %s310 = scalar_select %p309, %s19, 1
          %s311 = smul.addr %s310, 4
          %s312 = smul.addr %s311, 8
          %s313 = scalar_lea.vmem %s0, %s312
        $region56: #{tpu_custom_call.1} parent=51 // pred_fallthru
          _
      $region52: #{tpu_custom_call.1} parent=5 // pred_fallthru
        _
      %p314 = scmp.le.s32.totalorder 1, %s19
      %p315 = scmp.lt.s32.totalorder %s19, 3
      %p316 = pnand %p314, %p315
      %p317 = pneg %p316
      // Predicated region
      $region57: #{tpu_custom_call.1} parent=5 // pred_check
        _
      $region58: #{tpu_custom_call.1} parent=5 // pred_check_branch
        %319 = sbr.rel (%p316) target = $region60
      $region59: #{tpu_custom_call.1} parent=5 // pred_region
        %s320 = ssub.s32 %s19, 1
        %p321 = scmp.lt.s32.totalorder %s24, 1
        %s322 = scalar_select %p321, %s24, 1
        %s323 = smul.addr %s322, 4
        %s324 = smul.addr %s323, 8
        %s325 = scalar_lea.vmem %s0, %s324
        %p326 = pneg %p45
        %p327 = pneg %p42
        %p328 = pneg %p66
        %p329 = pneg %p63
        %p330 = pneg %p87
        %p331 = pneg %p84
        %p332 = pneg %p108
        %p333 = pneg %p105
        %p334 = pneg %p129
        %p335 = pneg %p126
        %p336 = pneg %p150
        %p337 = pneg %p147
        %p338 = pneg %p171
        %p339 = pneg %p168
        %p340 = pneg %p192
        %p341 = pneg %p189
        %p342 = pneg %p213
        %p343 = pneg %p210
        %p344 = pneg %p234
        %p345 = pneg %p231
        %p346 = pneg %p260
        %p347 = pneg %p257
        %s348 = sand.u32 %s247, 1
        %s349 = scalar_lea.sflag [#allocation3], %s348
        %s350 = sand.u32 %s247, 1
        %s351 = smul.addr %s350, 4
        %s352 = scalar_lea.vmem [#allocation2], %s351
        %p353 = scmp.lt.s32.totalorder %s24, 1
        %s354 = scalar_select %p353, %s24, 1
        %s355 = smul.addr %s354, 4
        %s356 = smul.addr %s355, 8
        %s357 = scalar_lea.vmem %s0, %s356
        %v359 = vld [vmem:[%s357] sm:$0xff]
        %v360 = vld [vmem:[%s357 + $0x8] sm:$0xff]
        %v361 = vld [vmem:[%s357 + $0x10] sm:$0xff]
        %v362 = vld [vmem:[%s357 + $0x18] sm:$0xff]
        loop: start=0, step=1, limit=4
        $region61: #{tpu_custom_call.1} parent=59 // loop_pre_header
          _
        $region62: #{tpu_custom_call.1} parent=59 // loop_header
          %s364 = sphi 0, %s368
          %p365 = scmp.ge.s32.totalorder %s364, 4
          %v369 = vphi %v359, %v606
          %v370 = vphi %v360, %v607
          %v371 = vphi %v361, %v608
          %v372 = vphi %v362, %v609
        $region63: #{tpu_custom_call.1} parent=59 // loop_header_branch
          %367 = sbr.rel (%p365) target = $region67
        $region64: #{tpu_custom_call.1} parent=59 // loop_body
          %vm373 = vcmask 130048
          %v374 = vsel %vm373, %v369, 0.0
          %375 = vadd.xlane.f32.xlu0 %v374
          %v376 = vpop.xlane.xlu0 %375
          %v377 = vsel %vm373, %v370, 0.0
          %378 = vadd.xlane.f32.xlu0 %v377
          %v379 = vpop.xlane.xlu0 %378
          %v380 = vsel %vm373, %v371, 0.0
          %381 = vadd.xlane.f32.xlu0 %v380
          %v382 = vpop.xlane.xlu0 %381
          %v383 = vsel %vm373, %v372, 0.0
          %384 = vadd.xlane.f32.xlu0 %v383
          %v385 = vpop.xlane.xlu0 %384
          %v386 = vrcp.pop 16.0
          %v387 = vmul.f32 %v376, %v386
          %v388 = vmul.f32 %v379, %v386
          %v389 = vmul.f32 %v382, %v386
          %v390 = vmul.f32 %v385, %v386
          %v391 = vsub.f32 %v369, %v387
          %v392 = vsub.f32 %v370, %v388
          %v393 = vsub.f32 %v371, %v389
          %v394 = vsub.f32 %v372, %v390
          %v395 = vmul.f32 %v391, %v391
          %v396 = vmul.f32 %v392, %v392
          %v397 = vmul.f32 %v393, %v393
          %v398 = vmul.f32 %v394, %v394
          %v399 = vsel %vm373, %v395, 0.0
          %400 = vadd.xlane.f32.xlu0 %v399
          %v401 = vpop.xlane.xlu0 %400
          %v402 = vsel %vm373, %v396, 0.0
          %403 = vadd.xlane.f32.xlu0 %v402
          %v404 = vpop.xlane.xlu0 %403
          %v405 = vsel %vm373, %v397, 0.0
          %406 = vadd.xlane.f32.xlu0 %v405
          %v407 = vpop.xlane.xlu0 %406
          %v408 = vsel %vm373, %v398, 0.0
          %409 = vadd.xlane.f32.xlu0 %v408
          %v410 = vpop.xlane.xlu0 %409
          %v411 = vmul.f32 %v401, %v386
          %v412 = vmul.f32 %v404, %v386
          %v413 = vmul.f32 %v407, %v386
          %v414 = vmul.f32 %v410, %v386
          %v415 = vadd.f32 %v411, 1e-05
          %v416 = vadd.f32 %v412, 1e-05
          %v417 = vadd.f32 %v413, 1e-05
          %v418 = vadd.f32 %v414, 1e-05
          %v419 = vrsqrt.pop %v415
          %v420 = vrsqrt.pop %v416
          %v421 = vrsqrt.pop %v417
          %v422 = vrsqrt.pop %v418
          %v423 = vmul.f32 %v391, %v419
          %v424 = vmul.f32 %v392, %v420
          %v425 = vmul.f32 %v393, %v421
          %v426 = vmul.f32 %v394, %v422
          %s427 = scalar_lea.vmem %s1, %s364
          %v428 = vld [vmem:[%s427] sm:$0x1]
          %v430 = vlaneseq
          %v431 = vshrl.u32 %v430, 7
          %v432 = vsub.s32 0, %v431
          %v433 = vrot.slane %v428, %v432
          %v435 = vmul.f32 %v423, %v433
          %v436 = vmul.f32 %v424, %v433
          %v437 = vmul.f32 %v425, %v433
          %v438 = vmul.f32 %v426, %v433
          %s439 = scalar_lea.vmem %s2, %s364
          %v440 = vld [vmem:[%s439] sm:$0x1]
          %v442 = vlaneseq
          %v443 = vshrl.u32 %v442, 7
          %v444 = vsub.s32 0, %v443
          %v445 = vrot.slane %v440, %v444
          %v447 = vadd.f32 %v435, %v445
          %v448 = vadd.f32 %v436, %v445
          %v449 = vadd.f32 %v437, %v445
          %v450 = vadd.f32 %v438, %v445
          %v451 = vpack.c.bf16 %v448, %v447
          %v452 = vpack.c.bf16 %v450, %v449
          %s453 = smul.u32 %s364, 2
          %s454 = smul.addr %s453, 4
          %s455 = scalar_lea.vmem %s3, %s454
          %v456 = vld [vmem:[%s455] sm:$0xf]
          %v457 = vld [vmem:[%s455 + $0x4] sm:$0xf]
          %s458 = scalar_lea.vmem %s4, %s364
          %v459 = vld [vmem:[%s458] sm:$0x1]
          %v461 = vlaneseq
          %v462 = vshrl.u32 %v461, 7
          %v463 = vsub.s32 0, %v462
          %v464 = vrot.slane %v459, %v463
          %v468 = vunpack.c.l.b16 %v456
          %v469 = vunpack.c.l.b16 %v457
          %v470 = vpack.c.b16 %v469, %v468
          %v473 = vsel %vm373, %v451, 0
          %v476 = vsel %vm373, %v452, 0
          %478 = vmatprep.subr.bf16.mxu0 0
          %479 = vmatpush1.bf16.msra.mxu0 0
          %480 = vmatprep.subr.bf16.mxu0 0
          %481 = vmatpush1.bf16.msra.mxu0 0
          %482 = vmatprep.subr.bf16.mxu0 0
          %483 = vmatpush1.bf16.msra.mxu0 0
          %484 = vmatprep.subr.bf16.mxu0 0
          %485 = vmatpush1.bf16.msra.mxu0 0
          %486 = vmatprep.subr.bf16.mxu0 0
          %487 = vmatpush1.bf16.msra.mxu0 0
          %488 = vmatprep.subr.bf16.mxu0 0
          %489 = vmatpush1.bf16.msra.mxu0 0
          %490 = vmatprep.subr.bf16.mxu0 0
          %491 = vmatpush1.bf16.msra.mxu0 0
          %492 = vmatprep.subr.bf16.mxu0 0
          %493 = vmatpush1.bf16.msra.mxu0 %v470
          %494 = vmatprep.subr.bf16.mxu0 0
          %495 = vmatpush2.bf16.msra.mxu0 0
          %496 = vmatprep.subr.bf16.mxu0 0
          %497 = vmatpush2.bf16.msra.mxu0 0
          %498 = vmatprep.subr.bf16.mxu0 0
          %499 = vmatpush2.bf16.msra.mxu0 0
          %500 = vmatprep.subr.bf16.mxu0 0
          %501 = vmatpush2.bf16.msra.mxu0 0
          %502 = vmatprep.subr.bf16.mxu0 0
          %503 = vmatpush2.bf16.msra.mxu0 0
          %504 = vmatprep.subr.bf16.mxu0 0
          %505 = vmatpush2.bf16.msra.mxu0 0
          %506 = vmatprep.subr.bf16.mxu0 0
          %507 = vmatpush2.bf16.msra.mxu0 0
          %508 = vmatprep.subr.bf16.mxu0 0
          %509 = vmatpush2.bf16.msra.mxu0 0
          %510 = vmatprep.mubr.bf16.mxu0 0
          %511 = vmatmul.mubr.bf16.gmra.mxu0 %v473
          %v512 = vpop.f32.mrf.mxu0
          %v513 = vadd.f32 %v464, %v512
          %v514 = vpop.f32.mrf.mxu0
          %v515 = vpop.f32.mrf.mxu0
          %v516 = vadd.f32 %v464, %v515
          %v517 = vpop.f32.mrf.mxu0
          %518 = vmatprep.mubr.bf16.mxu0 0
          %519 = vmatmul.mubr.bf16.gmra.mxu0 %v476
          %v520 = vpop.f32.mrf.mxu0
          %v521 = vadd.f32 %v464, %v520
          %v522 = vpop.f32.mrf.mxu0
          %v523 = vpop.f32.mrf.mxu0
          %v524 = vadd.f32 %v464, %v523
          %v525 = vpop.f32.mrf.mxu0
          %526 = vdwg.mxu0
          %v527 = vmax.f32 %v513, 0.0
          %v528 = vmax.f32 %v516, 0.0
          %v529 = vmax.f32 %v521, 0.0
          %v530 = vmax.f32 %v524, 0.0
          %v531 = vpack.c.bf16 %v528, %v527
          %v532 = vpack.c.bf16 %v530, %v529
          %s533 = smul.addr %s453, 4
          %s534 = scalar_lea.vmem %s5, %s533
          %v535 = vld [vmem:[%s534] sm:$0xf]
          %v536 = vld [vmem:[%s534 + $0x4] sm:$0xf]
          %s537 = scalar_lea.vmem %s6, %s364
          %v538 = vld [vmem:[%s537] sm:$0x1]
          %v540 = vlaneseq
          %v541 = vshrl.u32 %v540, 7
          %v542 = vsub.s32 0, %v541
          %v543 = vrot.slane %v538, %v542
          %v547 = vunpack.c.l.b16 %v535
          %v548 = vunpack.c.l.b16 %v536
          %v549 = vpack.c.b16 %v548, %v547
          %v552 = vsel %vm373, %v531, 0
          %v555 = vsel %vm373, %v532, 0
          %557 = vmatprep.subr.bf16.mxu0 0
          %558 = vmatpush1.bf16.msra.mxu0 0
          %559 = vmatprep.subr.bf16.mxu0 0
          %560 = vmatpush1.bf16.msra.mxu0 0
          %561 = vmatprep.subr.bf16.mxu0 0
          %562 = vmatpush1.bf16.msra.mxu0 0
          %563 = vmatprep.subr.bf16.mxu0 0
          %564 = vmatpush1.bf16.msra.mxu0 0
          %565 = vmatprep.subr.bf16.mxu0 0
          %566 = vmatpush1.bf16.msra.mxu0 0
          %567 = vmatprep.subr.bf16.mxu0 0
          %568 = vmatpush1.bf16.msra.mxu0 0
          %569 = vmatprep.subr.bf16.mxu0 0
          %570 = vmatpush1.bf16.msra.mxu0 0
          %571 = vmatprep.subr.bf16.mxu0 0
          %572 = vmatpush1.bf16.msra.mxu0 %v549
          %573 = vmatprep.subr.bf16.mxu0 0
          %574 = vmatpush2.bf16.msra.mxu0 0
          %575 = vmatprep.subr.bf16.mxu0 0
          %576 = vmatpush2.bf16.msra.mxu0 0
          %577 = vmatprep.subr.bf16.mxu0 0
          %578 = vmatpush2.bf16.msra.mxu0 0
          %579 = vmatprep.subr.bf16.mxu0 0
          %580 = vmatpush2.bf16.msra.mxu0 0
          %581 = vmatprep.subr.bf16.mxu0 0
          %582 = vmatpush2.bf16.msra.mxu0 0
          %583 = vmatprep.subr.bf16.mxu0 0
          %584 = vmatpush2.bf16.msra.mxu0 0
          %585 = vmatprep.subr.bf16.mxu0 0
          %586 = vmatpush2.bf16.msra.mxu0 0
          %587 = vmatprep.subr.bf16.mxu0 0
          %588 = vmatpush2.bf16.msra.mxu0 0
          %589 = vmatprep.mubr.bf16.mxu0 0
          %590 = vmatmul.mubr.bf16.gmra.mxu0 %v552
          %v591 = vpop.f32.mrf.mxu0
          %v592 = vadd.f32 %v543, %v591
          %v593 = vpop.f32.mrf.mxu0
          %v594 = vpop.f32.mrf.mxu0
          %v595 = vadd.f32 %v543, %v594
          %v596 = vpop.f32.mrf.mxu0
          %597 = vmatprep.mubr.bf16.mxu0 0
          %598 = vmatmul.mubr.bf16.gmra.mxu0 %v555
          %v599 = vpop.f32.mrf.mxu0
          %v600 = vadd.f32 %v543, %v599
          %v601 = vpop.f32.mrf.mxu0
          %v602 = vpop.f32.mrf.mxu0
          %v603 = vadd.f32 %v543, %v602
          %v604 = vpop.f32.mrf.mxu0
          %605 = vdwg.mxu0
          %v606 = vadd.f32 %v369, %v592
          %v607 = vadd.f32 %v370, %v595
          %v608 = vadd.f32 %v371, %v600
          %v609 = vadd.f32 %v372, %v603
        $region65: #{tpu_custom_call.1} parent=59 // loop_footer
          %s368 = sadd.s32 1, %s364
        $region66: #{tpu_custom_call.1} parent=59 // loop_footer_branch
          %363 = sbr.rel target = $region62
        $region67: #{tpu_custom_call.1} parent=59 // loop_exit
          _
        %v610 = vpack.c.bf16 %v370, %v369
        %v611 = vpack.c.bf16 %v372, %v371
        %v612 = vld [vmem:[%s7] sm:$0xf]
        %v613 = vld [vmem:[%s7 + $0x4] sm:$0xf]
        %v616 = vunpack.c.l.b16 %v612
        %v617 = vunpack.c.l.b16 %v613
        %v618 = vpack.c.b16 %v617, %v616
        %vm620 = vcmask 130048
        %v622 = vsel %vm620, %v610, 0
        %v625 = vsel %vm620, %v611, 0
        %627 = vmatprep.subr.bf16.mxu0 0
        %628 = vmatpush1.bf16.msra.mxu0 0
        %629 = vmatprep.subr.bf16.mxu0 0
        %630 = vmatpush1.bf16.msra.mxu0 0
        %631 = vmatprep.subr.bf16.mxu0 0
        %632 = vmatpush1.bf16.msra.mxu0 0
        %633 = vmatprep.subr.bf16.mxu0 0
        %634 = vmatpush1.bf16.msra.mxu0 0
        %635 = vmatprep.subr.bf16.mxu0 0
        %636 = vmatpush1.bf16.msra.mxu0 0
        %637 = vmatprep.subr.bf16.mxu0 0
        %638 = vmatpush1.bf16.msra.mxu0 0
        %639 = vmatprep.subr.bf16.mxu0 0
        %640 = vmatpush1.bf16.msra.mxu0 0
        %641 = vmatprep.subr.bf16.mxu0 0
        %642 = vmatpush1.bf16.msra.mxu0 %v618
        %643 = vmatprep.subr.bf16.mxu0 0
        %644 = vmatpush2.bf16.msra.mxu0 0
        %645 = vmatprep.subr.bf16.mxu0 0
        %646 = vmatpush2.bf16.msra.mxu0 0
        %647 = vmatprep.subr.bf16.mxu0 0
        %648 = vmatpush2.bf16.msra.mxu0 0
        %649 = vmatprep.subr.bf16.mxu0 0
        %650 = vmatpush2.bf16.msra.mxu0 0
        %651 = vmatprep.subr.bf16.mxu0 0
        %652 = vmatpush2.bf16.msra.mxu0 0
        %653 = vmatprep.subr.bf16.mxu0 0
        %654 = vmatpush2.bf16.msra.mxu0 0
        %655 = vmatprep.subr.bf16.mxu0 0
        %656 = vmatpush2.bf16.msra.mxu0 0
        %657 = vmatprep.subr.bf16.mxu0 0
        %658 = vmatpush2.bf16.msra.mxu0 0
        %659 = vmatprep.mubr.bf16.mxu0 0
        %660 = vmatmul.mubr.bf16.gmra.mxu0 %v622
        %v661 = vpop.f32.mrf.mxu0
        %v662 = vadd.f32 0.0, %v661
        %v663 = vpop.f32.mrf.mxu0
        %v664 = vpop.f32.mrf.mxu0
        %v665 = vadd.f32 0.0, %v664
        %v666 = vpop.f32.mrf.mxu0
        %667 = vmatprep.mubr.bf16.mxu0 0
        %668 = vmatmul.mubr.bf16.gmra.mxu0 %v625
        %v669 = vpop.f32.mrf.mxu0
        %v670 = vadd.f32 0.0, %v669
        %v671 = vpop.f32.mrf.mxu0
        %v672 = vpop.f32.mrf.mxu0
        %v673 = vadd.f32 0.0, %v672
        %v674 = vpop.f32.mrf.mxu0
        %675 = vdwg.mxu0
        %v676 = vpack.c.bf16 %v665, %v662
        %v677 = vpack.c.bf16 %v673, %v670
        %v678 = vld [vmem:[%s8] sm:$0xf]
        %v679 = vld [vmem:[%s8 + $0x4] sm:$0xf]
        %v680 = vld [vmem:[%s8 + $0x8] sm:$0xf]
        %v681 = vld [vmem:[%s8 + $0xc] sm:$0xf]
        %v682 = vld [vmem:[%s9] sm:$0xf]
        %683 = vxpose.xlu0.c.b16.start [1/8] %v676, 128
        %684 = vxpose.xlu0.c.b16.cont [2/8] %v677, 128
        %685 = vxpose.xlu0.c.b16.cont [3/8] 0, 128
        %686 = vxpose.xlu0.c.b16.cont [4/8] 0, 128
        %687 = vxpose.xlu0.c.b16.cont [5/8] 0, 128
        %688 = vxpose.xlu0.c.b16.cont [6/8] 0, 128
        %689 = vxpose.xlu0.c.b16.cont [7/8] 0, 128
        %690 = vxpose.xlu0.c.b16.end [8/8] 0, 128
        %v691 = vpop.trf.xlu0
        %v692 = vpop.trf.xlu0
        %v693 = vpop.trf.xlu0
        %v694 = vpop.trf.xlu0
        %v695 = vpop.trf.xlu0
        %v696 = vpop.trf.xlu0
        %v697 = vpop.trf.xlu0
        %v698 = vpop.trf.xlu0
        %v703 = vunpack.c.l.b16 %v678
        %v704 = vunpack.c.l.b16 %v679
        %v705 = vunpack.c.l.b16 %v680
        %v706 = vunpack.c.l.b16 %v681
        %v707 = vpack.c.b16 %v704, %v703
        %v708 = vpack.c.b16 %v706, %v705
        %vm711 = vcmask 261120
        %v713 = vsel %vm711, %v691, 0
        %715 = vmatprep.subr.bf16.mxu0 0
        %716 = vmatpush1.bf16.msra.mxu0 0
        %717 = vmatprep.subr.bf16.mxu0 0
        %718 = vmatpush1.bf16.msra.mxu0 0
        %719 = vmatprep.subr.bf16.mxu0 0
        %720 = vmatpush1.bf16.msra.mxu0 0
        %721 = vmatprep.subr.bf16.mxu0 0
        %722 = vmatpush1.bf16.msra.mxu0 0
        %723 = vmatprep.subr.bf16.mxu0 0
        %724 = vmatpush1.bf16.msra.mxu0 0
        %725 = vmatprep.subr.bf16.mxu0 0
        %726 = vmatpush1.bf16.msra.mxu0 0
        %727 = vmatprep.subr.bf16.mxu0 0
        %728 = vmatpush1.bf16.msra.mxu0 %v708
        %729 = vmatprep.subr.bf16.mxu0 0
        %730 = vmatpush1.bf16.msra.mxu0 %v707
        %731 = vmatprep.subr.bf16.mxu0 0
        %732 = vmatpush2.bf16.msra.mxu0 0
        %733 = vmatprep.subr.bf16.mxu0 0
        %734 = vmatpush2.bf16.msra.mxu0 0
        %735 = vmatprep.subr.bf16.mxu0 0
        %736 = vmatpush2.bf16.msra.mxu0 0
        %737 = vmatprep.subr.bf16.mxu0 0
        %738 = vmatpush2.bf16.msra.mxu0 0
        %739 = vmatprep.subr.bf16.mxu0 0
        %740 = vmatpush2.bf16.msra.mxu0 0
        %741 = vmatprep.subr.bf16.mxu0 0
        %742 = vmatpush2.bf16.msra.mxu0 0
        %743 = vmatprep.subr.bf16.mxu0 0
        %744 = vmatpush2.bf16.msra.mxu0 0
        %745 = vmatprep.subr.bf16.mxu0 0
        %746 = vmatpush2.bf16.msra.mxu0 0
        %747 = vmatprep.mubr.bf16.mxu0 0
        %748 = vmatmul.mubr.bf16.gmra.mxu0 %v713
        %v749 = vpop.f32.mrf.mxu0
        %v750 = vadd.f32 %v682, %v749
        %v751 = vpop.f32.mrf.mxu0
        %v752 = vpop.f32.mrf.mxu0
        %v753 = vpop.f32.mrf.mxu0
        %754 = vdwg.mxu0
        %v755 = vmul.f32 %v750, %v750
        %vm756 = vcmask 125952
        %v757 = vsel %vm756, %v755, 0.0
        %758 = vadd.xlane.f32.xlu0 %v757
        %v759 = vpop.xlane.xlu0 %758
        %v760 = vrot.slane %v759, 4
        %v761 = vadd.f32 %v759, %v760
        %v762 = vrot.slane %v761, 2
        %v763 = vadd.f32 %v761, %v762
        %v764 = vrot.slane %v763, 1
        %v765 = vadd.f32 %v763, %v764
        %s766 = vtos %v765
        %s767 = smax.f32 %s766, 1e-24
        %v768 = vstv %s767
        %v769 = vrsqrt.pop %v768
        %s770 = vtos %v769
        %v771 = vstv %s770
        %v772 = vmul.f32 %v750, %v771
        %773 = vst.msk [vmem:[%s352] sm:$0xf] %vm756, %v772
        %s774 = sand.u32 %s247, 1
        %s775 = scalar_lea.sflag [#allocation3], %s774
        %s776 = sand.u32 %s247, 1
        %s777 = smul.addr %s776, 4
        %s778 = scalar_lea.vmem [#allocation2], %s777
        // Predicated region
        $region68: #{tpu_custom_call.1} parent=59 // pred_check
          %p779 = pneg %p257
        $region69: #{tpu_custom_call.1} parent=59 // pred_check_branch
          %781 = sbr.rel (%p779) target = $region71
        $region70: #{tpu_custom_call.1} parent=59 // pred_region
          %s783 = ssub.s32 64, 64
          %784 = vsyncadd %s775, %s783
          %s785 = smul.addr %s24, 64
          %s786 = scalar_lea.hbm %s10, %s785
          %s788 = sshll.u32 %s778, 4
          %s789 = int_to_ptr.vmem [resolvable:$true] %s788
          %791 = dma.vmem_to_hbm [thread:$0]  %s789, 64, %s786, %s775
        $region71: #{tpu_custom_call.1} parent=59 // pred_fallthru
          _
      $region60: #{tpu_custom_call.1} parent=5 // pred_fallthru
        _
      %p792 = scmp.le.s32.totalorder 2, %s19
      // Predicated region
      $region72: #{tpu_custom_call.1} parent=5 // pred_check
        %p793 = pneg %p792
      $region73: #{tpu_custom_call.1} parent=5 // pred_check_branch
        %795 = sbr.rel (%p793) target = $region75
      $region74: #{tpu_custom_call.1} parent=5 // pred_region
        %s796 = ssub.s32 %s19, 2
        // Predicated region
        $region76: #{tpu_custom_call.1} parent=74 // pred_check
          %p797 = pneg %p263
        $region77: #{tpu_custom_call.1} parent=74 // pred_check_branch
          %799 = sbr.rel (%p797) target = $region79
        $region78: #{tpu_custom_call.1} parent=74 // pred_region
          %s800 = sand.u32 %s248, 1
          %s801 = scalar_lea.sflag [#allocation3], %s800
          %s802 = sand.u32 %s248, 1
          %s803 = smul.addr %s802, 4
          %s804 = scalar_lea.vmem [#allocation2], %s803
          %805 = dma.done %s801, 64
        $region79: #{tpu_custom_call.1} parent=74 // pred_fallthru
          _
      $region75: #{tpu_custom_call.1} parent=5 // pred_fallthru
        _
    $region6: #{tpu_custom_call.1} parent=1 // loop_footer
      %s23 = sadd.s32 1, %s19
    $region7: #{tpu_custom_call.1} parent=1 // loop_footer_branch
      %18 = sbr.rel target = $region3
    $region8: #{tpu_custom_call.1} parent=1 // loop_exit
      _
    %806 = vsyncpa [#allocation3], 1
    %s807 = scalar_lea.sflag [#allocation3], 1
    %808 = vsyncpa %s807, 1

</llo_original>
